<compile_context>
chip_gen: v7x
topology: tpu7x:2x2x1
jax: 0.10.0
libtpu: 0.0.40
codegen_flags: <defaults>
</compile_context>

<pallas_src>
import functools

import jax
import jax.numpy as jnp
from jax.experimental import pallas as pl
from jax.experimental.pallas import tpu as pltpu


def rate_embedding_kernel(x_ref, w1_ref, b1_ref, gamma_ref, beta_ref,
                          w2_ref, b2_ref, out_ref):
    """Fused head: sigmoid( relu(LN(x@W1 + b1 + x)) . w2 + b2 ) (dropout = eval id)."""
    # l_1_<emotion>: Linear(H, H) on the MXU; f32 accumulate (x/W1 may be bf16).
    x = x_ref[...]
    h = jnp.dot(x, w1_ref[...], preferred_element_type=jnp.float32)
    h = h + b1_ref[...] + x.astype(jnp.float32)                 # bias + residual, f32

    # LayerNorm over hidden, folded to a single scale/shift pass (stats in f32):
    #   mean = E[h], var = E[h^2] - mean^2,
    #   scale = gamma * rsqrt(var + eps), shift = beta - mean * scale.
    # No centered / normalized (bt, H) temporaries are materialized.
    inv_h = 1.0 / h.shape[-1]
    mean = jnp.sum(h, axis=-1, keepdims=True) * inv_h
    mean_sq = jnp.sum(h * h, axis=-1, keepdims=True) * inv_h
    var = mean_sq - mean * mean
    scale = gamma_ref[...] * jax.lax.rsqrt(var + 1e-5)          # eps = torch default
    shift = beta_ref[...] - mean * scale

    # Dropout: eval mode -> identity (p=0.2 only at train time).  ReLU, then the
    # <emotion> Linear(H, 1) as a VPU multiply + XLU lane reduction (w2 is (1, H)).
    a = jnp.maximum(h * scale + shift, 0.0)
    logits = jnp.sum(a * w2_ref[...], axis=-1, keepdims=True) + b2_ref[0]
    out_ref[...] = jax.nn.sigmoid(logits)


def _const_spec(shape, single_buffer):
    """BlockSpec for a grid-invariant operand (same block every grid step)."""
    if single_buffer:
        # Constant index_map -> fetched once; request one VMEM buffer, not two.
        return pl.BlockSpec(shape, lambda i: (0, 0),
                            pipeline_mode=pl.Buffered(buffer_count=1))
    return pl.BlockSpec(shape, lambda i: (0, 0))


@functools.partial(
    jax.jit,
    static_argnames=("batch_tile", "compute_dtype", "single_buffer_consts"))
def _rate_embedding_call(x, w1, b1, gamma, beta, w2, b2, *, batch_tile,
                         compute_dtype, single_buffer_consts):
    B, H = x.shape
    align = 16 if compute_dtype == jnp.bfloat16 else 8  # bf16 packs 16 rows/sublane grp

    bt = min(batch_tile, B)
    if bt < B:
        bt = max(align, (bt // align) * align)           # multi-step tiles must align
    elif B >= 2 * align:
        # Grid would be a single step; split so the "parallel" batch axis has >= 2
        # steps and both of v7x's TensorCores get work.
        bt = ((pl.cdiv(B, 2) + align - 1) // align) * align
    grid = pl.cdiv(B, bt)                                # ragged last block is masked

    x = x.astype(compute_dtype)
    w1 = w1.astype(compute_dtype)

    # Advisory hint so XLA overlaps the surrounding graph with this custom call.
    cost = pl.CostEstimate(
        flops=2 * B * H * H + 2 * B * H,
        transcendentals=2 * B,                           # rsqrt + sigmoid per row
        bytes_accessed=(x.size * x.dtype.itemsize
                        + w1.size * w1.dtype.itemsize
                        + 4 * (b1.size + gamma.size + beta.size + w2.size + b2.size)
                        + 4 * B))

    return pl.pallas_call(
        rate_embedding_kernel,
        out_shape=jax.ShapeDtypeStruct((B, 1), jnp.float32),
        grid_spec=pltpu.PrefetchScalarGridSpec(
            num_scalar_prefetch=0,
            grid=(grid,),
            in_specs=[
                pl.BlockSpec((bt, H), lambda i: (i, 0)),               # x tile
                _const_spec((H, H), single_buffer_consts),             # W1 [in, out]
                _const_spec((1, H), single_buffer_consts),             # b1
                _const_spec((1, H), single_buffer_consts),             # LN gamma
                _const_spec((1, H), single_buffer_consts),             # LN beta
                _const_spec((1, H), single_buffer_consts),             # W2 row [1, H]
                pl.BlockSpec(memory_space=pltpu.MemorySpace.SMEM),     # b2 scalar
            ],
            out_specs=pl.BlockSpec((bt, 1), lambda i: (i, 0)),
        ),
        compiler_params=pltpu.CompilerParams(
            # Batch axis is embarrassingly parallel -> shards across v7x's 2 TCs.
            dimension_semantics=("parallel",),
            # ~8 MiB live at bt=512, H=768 bf16 (double-buffered x + single W1 +
            # f32 intermediates); 48 MiB gives sweep headroom on v5e/v6e and stays
            # within v7x's 64 MiB physical VMEM.
            vmem_limit_bytes=48 * 1024 * 1024,
        ),
        cost_estimate=cost,
    )(x, w1, b1, gamma, beta, w2, b2)


def bert_regression_head(x, w1, b1, gamma, beta, w2, b2, *,
                         batch_tile=512, compute_dtype=jnp.bfloat16):
    """x: [B, H] pooled features.  w1: [H, H] (in, out); b1/gamma/beta: [1, H];
    w2: [1, H] (torch's [out=1, in=H] row); b2: [1].  Returns [B, 1] f32 ratings."""
    try:
        return _rate_embedding_call(x, w1, b1, gamma, beta, w2, b2,
                                    batch_tile=batch_tile,
                                    compute_dtype=compute_dtype,
                                    single_buffer_consts=True)
    except Exception:
        # pl.Buffered(1) pipeline_mode not supported by this JAX/Mosaic version:
        # fall back to default double-buffered invariant blocks (one extra VMEM
        # copy of W1; still far under budget at hidden <= ~2048 bf16).
        return _rate_embedding_call(x, w1, b1, gamma, beta, w2, b2,
                                    batch_tile=batch_tile,
                                    compute_dtype=compute_dtype,
                                    single_buffer_consts=False)


def init_params(key, hidden_dim):
    """Deterministic init mirroring nn.Linear default (U(-1/sqrt(in), 1/sqrt(in)))
    and nn.LayerNorm default (gamma=1, beta=0)."""
    k1, k2, k3, k4 = jax.random.split(key, 4)
    bound = 1.0 / jnp.sqrt(hidden_dim)
    w1 = jax.random.uniform(k1, (hidden_dim, hidden_dim), jnp.float32, -bound, bound)
    b1 = jax.random.uniform(k2, (1, hidden_dim), jnp.float32, -bound, bound)
    gamma = jnp.ones((1, hidden_dim), jnp.float32)
    beta = jnp.zeros((1, hidden_dim), jnp.float32)
    w2 = jax.random.uniform(k3, (1, hidden_dim), jnp.float32, -bound, bound)  # [out=1, in=H]
    b2 = jax.random.uniform(k4, (1,), jnp.float32, -bound, bound)
    return w1, b1, gamma, beta, w2, b2


def reference(x, w1, b1, gamma, beta, w2, b2):
    """Pure-JAX reference of rate_embedding (eval mode) for sanity checking."""
    h = jnp.dot(x, w1, precision=jax.lax.Precision.HIGHEST) + b1 + x
    mean = h.mean(-1, keepdims=True)
    var = ((h - mean) ** 2).mean(-1, keepdims=True)
    hn = (h - mean) / jnp.sqrt(var + 1e-5) * gamma + beta
    a = jnp.maximum(hn, 0.0)
    logits = jnp.dot(a, w2.T, precision=jax.lax.Precision.HIGHEST) + b2
    return jax.nn.sigmoid(logits)


if __name__ == "__main__":
    key = jax.random.PRNGKey(0)
    kx, kp, kx2 = jax.random.split(key, 3)

    hidden_dim = 32            # small stand-in for 768
    batch = 8
    # x models the concatenated pooled backbone output (dim=1 concat of 1 model).
    x = jax.random.normal(kx, (batch, hidden_dim), jnp.float32)
    params = init_params(kp, hidden_dim)
    ref = reference(x, *params)

    # Default path: bf16 x/W1 on the MXU with f32 accumulation (loosened tolerance).
    out = jax.block_until_ready(bert_regression_head(x, *params))
    assert out.shape == (batch, 1)
    assert jnp.allclose(out, ref, atol=5e-2, rtol=5e-2), "bf16 mismatch vs reference"

    # f32 path: checks the fused scale/shift LayerNorm numerics more tightly.
    out_f32 = jax.block_until_ready(
        bert_regression_head(x, *params, compute_dtype=jnp.float32))
    assert jnp.allclose(out_f32, ref, atol=5e-3, rtol=5e-3), "f32 mismatch vs reference"

    # Multi-step grid with a ragged last block: exercises the >=2-step tile split
    # (v7x dual-TC path) plus the masked edge block (no wrapper-side padding).
    batch2 = 40
    x2 = jax.random.normal(kx2, (batch2, hidden_dim), jnp.float32)
    ref2 = reference(x2, *params)
    out2 = jax.block_until_ready(bert_regression_head(x2, *params))
    assert out2.shape == (batch2, 1)
    assert jnp.allclose(out2, ref2, atol=5e-2, rtol=5e-2), "ragged-grid mismatch vs reference"

    print("KERNEL_OK")
</pallas_src>

<mosaic_0001>
module attributes {stable_mosaic.version = 11 : i64} {
  func.func @rate_embedding_kernel(%arg0: i32, %arg1: memref<8x32xbf16, #tpu.memory_space<vmem>>, %arg2: memref<32x32xbf16, #tpu.memory_space<vmem>>, %arg3: memref<1x32xf32, #tpu.memory_space<vmem>>, %arg4: memref<1x32xf32, #tpu.memory_space<vmem>>, %arg5: memref<1x32xf32, #tpu.memory_space<vmem>>, %arg6: memref<1x32xf32, #tpu.memory_space<vmem>>, %arg7: memref<1xf32, #tpu.memory_space<smem>>, %arg8: memref<8x1xf32, #tpu.memory_space<vmem>>) attributes {dimension_semantics = [#tpu.dimension_semantics<parallel>], iteration_bounds = array<i64: 1>, scalar_prefetch = 0 : i64, scratch_operands = 0 : i64, tpu.core_type = #tpu.core_type<tc>, window_params = [{transform_indices = @transform_0, window_bounds = array<i64: 8, 32>}, {pipeline_mode = #tpu.pipeline_mode<synchronous>, transform_indices = @transform_1, window_bounds = array<i64: 32, 32>}, {pipeline_mode = #tpu.pipeline_mode<synchronous>, transform_indices = @transform_2, window_bounds = array<i64: 1, 32>}, {pipeline_mode = #tpu.pipeline_mode<synchronous>, transform_indices = @transform_3, window_bounds = array<i64: 1, 32>}, {pipeline_mode = #tpu.pipeline_mode<synchronous>, transform_indices = @transform_4, window_bounds = array<i64: 1, 32>}, {pipeline_mode = #tpu.pipeline_mode<synchronous>, transform_indices = @transform_5, window_bounds = array<i64: 1, 32>}, {transform_indices = @transform_6, window_bounds = array<i64: 1>}, {transform_indices = @transform_7, window_bounds = array<i64: 8, 1>}]} {
    %c0 = arith.constant 0 : index
    %c0_0 = arith.constant 0 : index
    %0 = vector.load %arg1[%c0, %c0_0] : memref<8x32xbf16, #tpu.memory_space<vmem>>, vector<8x32xbf16>
    %c0_1 = arith.constant 0 : index
    %c0_2 = arith.constant 0 : index
    %1 = vector.load %arg2[%c0_1, %c0_2] : memref<32x32xbf16, #tpu.memory_space<vmem>>, vector<32x32xbf16>
    %cst = arith.constant dense<0.000000e+00> : vector<8x32xf32>
    %2 = tpu.matmul %0, %1, %cst {dimension_numbers = #tpu.dot_dimension_numbers<[1], [0], [0], [1], [0, 0, 1, 1], [], []>} : vector<8x32xbf16>, vector<32x32xbf16>, vector<8x32xf32> -> vector<8x32xf32>
    %c0_3 = arith.constant 0 : index
    %c0_4 = arith.constant 0 : index
    %3 = vector.load %arg3[%c0_3, %c0_4] : memref<1x32xf32, #tpu.memory_space<vmem>>, vector<1x32xf32>
    %4 = vector.broadcast %3 : vector<1x32xf32> to vector<8x32xf32>
    %5 = arith.addf %2, %4 : vector<8x32xf32>
    %6 = arith.extf %0 : vector<8x32xbf16> to vector<8x32xf32>
    %7 = arith.addf %5, %6 : vector<8x32xf32>
    %cst_5 = arith.constant dense<0.000000e+00> : vector<8xf32>
    %8 = vector.multi_reduction <add>, %7, %cst_5 [1] : vector<8x32xf32> to vector<8xf32>
    %9 = vector.shape_cast %8 : vector<8xf32> to vector<8x1xf32>
    %cst_6 = arith.constant 3.125000e-02 : f32
    %10 = vector.broadcast %cst_6 : f32 to vector<8x1xf32>
    %11 = arith.mulf %9, %10 : vector<8x1xf32>
    %12 = arith.mulf %7, %7 : vector<8x32xf32>
    %cst_7 = arith.constant dense<0.000000e+00> : vector<8xf32>
    %13 = vector.multi_reduction <add>, %12, %cst_7 [1] : vector<8x32xf32> to vector<8xf32>
    %14 = vector.shape_cast %13 : vector<8xf32> to vector<8x1xf32>
    %cst_8 = arith.constant 3.125000e-02 : f32
    %15 = vector.broadcast %cst_8 : f32 to vector<8x1xf32>
    %16 = arith.mulf %14, %15 : vector<8x1xf32>
    %17 = arith.mulf %11, %11 : vector<8x1xf32>
    %18 = arith.subf %16, %17 : vector<8x1xf32>
    %c0_9 = arith.constant 0 : index
    %c0_10 = arith.constant 0 : index
    %19 = vector.load %arg4[%c0_9, %c0_10] : memref<1x32xf32, #tpu.memory_space<vmem>>, vector<1x32xf32>
    %cst_11 = arith.constant 9.99999974E-6 : f32
    %20 = vector.broadcast %cst_11 : f32 to vector<8x1xf32>
    %21 = arith.addf %18, %20 : vector<8x1xf32>
    %22 = math.rsqrt %21 : vector<8x1xf32>
    %23 = vector.broadcast %19 : vector<1x32xf32> to vector<8x32xf32>
    %24 = vector.broadcast %22 : vector<8x1xf32> to vector<8x32xf32>
    %25 = arith.mulf %23, %24 : vector<8x32xf32>
    %c0_12 = arith.constant 0 : index
    %c0_13 = arith.constant 0 : index
    %26 = vector.load %arg5[%c0_12, %c0_13] : memref<1x32xf32, #tpu.memory_space<vmem>>, vector<1x32xf32>
    %27 = vector.broadcast %11 : vector<8x1xf32> to vector<8x32xf32>
    %28 = arith.mulf %27, %25 : vector<8x32xf32>
    %29 = vector.broadcast %26 : vector<1x32xf32> to vector<8x32xf32>
    %30 = arith.subf %29, %28 : vector<8x32xf32>
    %31 = arith.mulf %7, %25 : vector<8x32xf32>
    %32 = arith.addf %31, %30 : vector<8x32xf32>
    %cst_14 = arith.constant 0.000000e+00 : f32
    %33 = vector.broadcast %cst_14 : f32 to vector<8x32xf32>
    %34 = arith.maximumf %32, %33 : vector<8x32xf32>
    %c0_15 = arith.constant 0 : index
    %c0_16 = arith.constant 0 : index
    %35 = vector.load %arg6[%c0_15, %c0_16] : memref<1x32xf32, #tpu.memory_space<vmem>>, vector<1x32xf32>
    %36 = vector.broadcast %35 : vector<1x32xf32> to vector<8x32xf32>
    %37 = arith.mulf %34, %36 : vector<8x32xf32>
    %cst_17 = arith.constant dense<0.000000e+00> : vector<8xf32>
    %38 = vector.multi_reduction <add>, %37, %cst_17 [1] : vector<8x32xf32> to vector<8xf32>
    %39 = vector.shape_cast %38 : vector<8xf32> to vector<8x1xf32>
    %c0_18 = arith.constant 0 : index
    %40 = memref.load %arg7[%c0_18] : memref<1xf32, #tpu.memory_space<smem>>
    %41 = vector.broadcast %40 : f32 to vector<8x1xf32>
    %42 = arith.addf %39, %41 : vector<8x1xf32>
    %43 = arith.negf %42 : vector<8x1xf32>
    %44 = math.exp %43 : vector<8x1xf32>
    %cst_19 = arith.constant 1.000000e+00 : f32
    %45 = vector.broadcast %cst_19 : f32 to vector<8x1xf32>
    %46 = arith.addf %45, %44 : vector<8x1xf32>
    %47 = arith.divf %45, %46 : vector<8x1xf32>
    %c0_20 = arith.constant 0 : index
    %c0_21 = arith.constant 0 : index
    %48 = vector.load %arg8[%c0_20, %c0_21] : memref<8x1xf32, #tpu.memory_space<vmem>>, vector<8x1xf32>
    tpu.vector_store %arg8[%c0_20, %c0_21], %47 {strides = array<i32>} : memref<8x1xf32, #tpu.memory_space<vmem>>, vector<8x1xf32>,
    return
  }
  func.func @transform_0(%arg0: i32) -> (i32, i32) {
    %c0_i32 = arith.constant 0 : i32
    %c0_i32_0 = arith.constant 0 : i32
    return %arg0, %c0_i32 : i32, i32
  }
  func.func @transform_1(%arg0: i32) -> (i32, i32) {
    %c0_i32 = arith.constant 0 : i32
    %c0_i32_0 = arith.constant 0 : i32
    %c0_i32_1 = arith.constant 0 : i32
    return %c0_i32, %c0_i32_0 : i32, i32
  }
  func.func @transform_2(%arg0: i32) -> (i32, i32) {
    %c0_i32 = arith.constant 0 : i32
    %c0_i32_0 = arith.constant 0 : i32
    %c0_i32_1 = arith.constant 0 : i32
    return %c0_i32, %c0_i32_0 : i32, i32
  }
  func.func @transform_3(%arg0: i32) -> (i32, i32) {
    %c0_i32 = arith.constant 0 : i32
    %c0_i32_0 = arith.constant 0 : i32
    %c0_i32_1 = arith.constant 0 : i32
    return %c0_i32, %c0_i32_0 : i32, i32
  }
  func.func @transform_4(%arg0: i32) -> (i32, i32) {
    %c0_i32 = arith.constant 0 : i32
    %c0_i32_0 = arith.constant 0 : i32
    %c0_i32_1 = arith.constant 0 : i32
    return %c0_i32, %c0_i32_0 : i32, i32
  }
  func.func @transform_5(%arg0: i32) -> (i32, i32) {
    %c0_i32 = arith.constant 0 : i32
    %c0_i32_0 = arith.constant 0 : i32
    %c0_i32_1 = arith.constant 0 : i32
    return %c0_i32, %c0_i32_0 : i32, i32
  }
  func.func @transform_6(%arg0: i32) -> i32 {
    %c0_i32 = arith.constant 0 : i32
    %c0_i32_0 = arith.constant 0 : i32
    return %c0_i32 : i32
  }
  func.func @transform_7(%arg0: i32) -> (i32, i32) {
    %c0_i32 = arith.constant 0 : i32
    %c0_i32_0 = arith.constant 0 : i32
    return %arg0, %c0_i32 : i32, i32
  }
}

module attributes {stable_mosaic.version = 11 : i64} {
  func.func @rate_embedding_kernel(%arg0: i32, %arg1: memref<8x32xbf16, #tpu.memory_space<vmem>>, %arg2: memref<32x32xbf16, #tpu.memory_space<vmem>>, %arg3: memref<1x32xf32, #tpu.memory_space<vmem>>, %arg4: memref<1x32xf32, #tpu.memory_space<vmem>>, %arg5: memref<1x32xf32, #tpu.memory_space<vmem>>, %arg6: memref<1x32xf32, #tpu.memory_space<vmem>>, %arg7: memref<1xf32, #tpu.memory_space<smem>>, %arg8: memref<8x1xf32, #tpu.memory_space<vmem>>) attributes {dimension_semantics = [#tpu.dimension_semantics<parallel>], iteration_bounds = array<i64: 1>, scalar_prefetch = 0 : i64, scratch_operands = 0 : i64, tpu.core_type = #tpu.core_type<tc>, window_params = [{transform_indices = @transform_0, window_bounds = array<i64: 8, 32>}, {pipeline_mode = #tpu.pipeline_mode<synchronous>, transform_indices = @transform_1, window_bounds = array<i64: 32, 32>}, {pipeline_mode = #tpu.pipeline_mode<synchronous>, transform_indices = @transform_2, window_bounds = array<i64: 1, 32>}, {pipeline_mode = #tpu.pipeline_mode<synchronous>, transform_indices = @transform_3, window_bounds = array<i64: 1, 32>}, {pipeline_mode = #tpu.pipeline_mode<synchronous>, transform_indices = @transform_4, window_bounds = array<i64: 1, 32>}, {pipeline_mode = #tpu.pipeline_mode<synchronous>, transform_indices = @transform_5, window_bounds = array<i64: 1, 32>}, {transform_indices = @transform_6, window_bounds = array<i64: 1>}, {transform_indices = @transform_7, window_bounds = array<i64: 8, 1>}]} {
    %c0 = arith.constant 0 : index
    %c0_0 = arith.constant 0 : index
    %0 = vector.load %arg1[%c0, %c0_0] : memref<8x32xbf16, #tpu.memory_space<vmem>>, vector<8x32xbf16>
    %c0_1 = arith.constant 0 : index
    %c0_2 = arith.constant 0 : index
    %1 = vector.load %arg2[%c0_1, %c0_2] : memref<32x32xbf16, #tpu.memory_space<vmem>>, vector<32x32xbf16>
    %cst = arith.constant dense<0.000000e+00> : vector<8x32xf32>
    %2 = tpu.matmul %0, %1, %cst {dimension_numbers = #tpu.dot_dimension_numbers<[1], [0], [0], [1], [0, 0, 1, 1], [], []>} : vector<8x32xbf16>, vector<32x32xbf16>, vector<8x32xf32> -> vector<8x32xf32>
    %c0_3 = arith.constant 0 : index
    %c0_4 = arith.constant 0 : index
    %3 = vector.load %arg3[%c0_3, %c0_4] : memref<1x32xf32, #tpu.memory_space<vmem>>, vector<1x32xf32>
    %4 = vector.broadcast %3 : vector<1x32xf32> to vector<8x32xf32>
    %5 = arith.addf %2, %4 : vector<8x32xf32>
    %6 = arith.extf %0 : vector<8x32xbf16> to vector<8x32xf32>
    %7 = arith.addf %5, %6 : vector<8x32xf32>
    %cst_5 = arith.constant dense<0.000000e+00> : vector<8xf32>
    %8 = vector.multi_reduction <add>, %7, %cst_5 [1] : vector<8x32xf32> to vector<8xf32>
    %9 = vector.shape_cast %8 : vector<8xf32> to vector<8x1xf32>
    %cst_6 = arith.constant 3.125000e-02 : f32
    %10 = vector.broadcast %cst_6 : f32 to vector<8x1xf32>
    %11 = arith.mulf %9, %10 : vector<8x1xf32>
    %12 = arith.mulf %7, %7 : vector<8x32xf32>
    %cst_7 = arith.constant dense<0.000000e+00> : vector<8xf32>
    %13 = vector.multi_reduction <add>, %12, %cst_7 [1] : vector<8x32xf32> to vector<8xf32>
    %14 = vector.shape_cast %13 : vector<8xf32> to vector<8x1xf32>
    %cst_8 = arith.constant 3.125000e-02 : f32
    %15 = vector.broadcast %cst_8 : f32 to vector<8x1xf32>
    %16 = arith.mulf %14, %15 : vector<8x1xf32>
    %17 = arith.mulf %11, %11 : vector<8x1xf32>
    %18 = arith.subf %16, %17 : vector<8x1xf32>
    %c0_9 = arith.constant 0 : index
    %c0_10 = arith.constant 0 : index
    %19 = vector.load %arg4[%c0_9, %c0_10] : memref<1x32xf32, #tpu.memory_space<vmem>>, vector<1x32xf32>
    %cst_11 = arith.constant 9.99999974E-6 : f32
    %20 = vector.broadcast %cst_11 : f32 to vector<8x1xf32>
    %21 = arith.addf %18, %20 : vector<8x1xf32>
    %22 = math.rsqrt %21 : vector<8x1xf32>
    %23 = vector.broadcast %19 : vector<1x32xf32> to vector<8x32xf32>
    %24 = vector.broadcast %22 : vector<8x1xf32> to vector<8x32xf32>
    %25 = arith.mulf %23, %24 : vector<8x32xf32>
    %c0_12 = arith.constant 0 : index
    %c0_13 = arith.constant 0 : index
    %26 = vector.load %arg5[%c0_12, %c0_13] : memref<1x32xf32, #tpu.memory_space<vmem>>, vector<1x32xf32>
    %27 = vector.broadcast %11 : vector<8x1xf32> to vector<8x32xf32>
    %28 = arith.mulf %27, %25 : vector<8x32xf32>
    %29 = vector.broadcast %26 : vector<1x32xf32> to vector<8x32xf32>
    %30 = arith.subf %29, %28 : vector<8x32xf32>
    %31 = arith.mulf %7, %25 : vector<8x32xf32>
    %32 = arith.addf %31, %30 : vector<8x32xf32>
    %cst_14 = arith.constant 0.000000e+00 : f32
    %33 = vector.broadcast %cst_14 : f32 to vector<8x32xf32>
    %34 = arith.maximumf %32, %33 : vector<8x32xf32>
    %c0_15 = arith.constant 0 : index
    %c0_16 = arith.constant 0 : index
    %35 = vector.load %arg6[%c0_15, %c0_16] : memref<1x32xf32, #tpu.memory_space<vmem>>, vector<1x32xf32>
    %36 = vector.broadcast %35 : vector<1x32xf32> to vector<8x32xf32>
    %37 = arith.mulf %34, %36 : vector<8x32xf32>
    %cst_17 = arith.constant dense<0.000000e+00> : vector<8xf32>
    %38 = vector.multi_reduction <add>, %37, %cst_17 [1] : vector<8x32xf32> to vector<8xf32>
    %39 = vector.shape_cast %38 : vector<8xf32> to vector<8x1xf32>
    %c0_18 = arith.constant 0 : index
    %40 = memref.load %arg7[%c0_18] : memref<1xf32, #tpu.memory_space<smem>>
    %41 = vector.broadcast %40 : f32 to vector<8x1xf32>
    %42 = arith.addf %39, %41 : vector<8x1xf32>
    %43 = arith.negf %42 : vector<8x1xf32>
    %44 = math.exp %43 : vector<8x1xf32>
    %cst_19 = arith.constant 1.000000e+00 : f32
    %45 = vector.broadcast %cst_19 : f32 to vector<8x1xf32>
    %46 = arith.addf %45, %44 : vector<8x1xf32>
    %47 = arith.divf %45, %46 : vector<8x1xf32>
    %c0_20 = arith.constant 0 : index
    %c0_21 = arith.constant 0 : index
    %48 = vector.load %arg8[%c0_20, %c0_21] : memref<8x1xf32, #tpu.memory_space<vmem>>, vector<8x1xf32>
    tpu.vector_store %arg8[%c0_20, %c0_21], %47 {strides = array<i32>} : memref<8x1xf32, #tpu.memory_space<vmem>>, vector<8x1xf32>,
    return
  }
  func.func @transform_0(%arg0: i32) -> (i32, i32) {
    %c0_i32 = arith.constant 0 : i32
    %c0_i32_0 = arith.constant 0 : i32
    return %arg0, %c0_i32 : i32, i32
  }
  func.func @transform_1(%arg0: i32) -> (i32, i32) {
    %c0_i32 = arith.constant 0 : i32
    %c0_i32_0 = arith.constant 0 : i32
    %c0_i32_1 = arith.constant 0 : i32
    return %c0_i32, %c0_i32_0 : i32, i32
  }
  func.func @transform_2(%arg0: i32) -> (i32, i32) {
    %c0_i32 = arith.constant 0 : i32
    %c0_i32_0 = arith.constant 0 : i32
    %c0_i32_1 = arith.constant 0 : i32
    return %c0_i32, %c0_i32_0 : i32, i32
  }
  func.func @transform_3(%arg0: i32) -> (i32, i32) {
    %c0_i32 = arith.constant 0 : i32
    %c0_i32_0 = arith.constant 0 : i32
    %c0_i32_1 = arith.constant 0 : i32
    return %c0_i32, %c0_i32_0 : i32, i32
  }
  func.func @transform_4(%arg0: i32) -> (i32, i32) {
    %c0_i32 = arith.constant 0 : i32
    %c0_i32_0 = arith.constant 0 : i32
    %c0_i32_1 = arith.constant 0 : i32
    return %c0_i32, %c0_i32_0 : i32, i32
  }
  func.func @transform_5(%arg0: i32) -> (i32, i32) {
    %c0_i32 = arith.constant 0 : i32
    %c0_i32_0 = arith.constant 0 : i32
    %c0_i32_1 = arith.constant 0 : i32
    return %c0_i32, %c0_i32_0 : i32, i32
  }
  func.func @transform_6(%arg0: i32) -> i32 {
    %c0_i32 = arith.constant 0 : i32
    %c0_i32_0 = arith.constant 0 : i32
    return %c0_i32 : i32
  }
  func.func @transform_7(%arg0: i32) -> (i32, i32) {
    %c0_i32 = arith.constant 0 : i32
    %c0_i32_0 = arith.constant 0 : i32
    return %arg0, %c0_i32 : i32, i32
  }
}

</mosaic_0001>

<llo_original>
// kernel: _rate_embedding_call.1
$region0: #{_rate_embedding_call.1}
  #allocation0 [shape = 'u32[]', space=smem, size = 0x4, offset = 0x4, fixed_abs, tag = 'smem constant byte address 0x4 - core index']
  #allocation1 [shape = 'u32[144,128]{1,0:T(1,128)}', space=vmem, size = 0x12000, scoped, tag = 'internal scratch']
  #allocation2 [shape = 'f32[1]{0:T(128)S(6)}', space=smem, size = 0x200, scoped, tag = 'scoped memory for _rate_embedding_call.1']
  %s0 = inlined_call_operand.vmem [shape: bf16[8,32], index: 0, kind: input, shape index: {}]
  %s1 = inlined_call_operand.vmem [shape: bf16[32,32], index: 1, kind: input, shape index: {}]
  %s2 = inlined_call_operand.vmem [shape: f32[1,32], index: 2, kind: input, shape index: {}]
  %s3 = inlined_call_operand.vmem [shape: f32[1,32], index: 3, kind: input, shape index: {}]
  %s4 = inlined_call_operand.vmem [shape: f32[1,32], index: 4, kind: input, shape index: {}]
  %s5 = inlined_call_operand.vmem [shape: f32[1,32], index: 5, kind: input, shape index: {}]
  %s6 = inlined_call_operand.<no memory space> [shape: f32[1], index: 6, kind: input, shape index: {}]
  %s7 = inlined_call_operand.vmem [shape: f32[8,1], index: 7, kind: output, shape index: {}]
  %s8 = sld [smem:[#allocation0]]
  $region38: #{_rate_embedding_call.1} parent=0
    _
  %s10 = ssub.s32 1, %s8
  %s11 = scalar_select 0, %s10, %s8
  %12 = sst [smem:[#allocation2]] %s6
  // Predicated region
  $region2: #{_rate_embedding_call.1} parent=0 // pred_check
    _
  $region3: #{_rate_embedding_call.1} parent=0 // pred_check_branch
    %14 = sbr.rel (0) target = $region5
  $region4: #{_rate_embedding_call.1} parent=0 // pred_region
    _
  $region5: #{_rate_embedding_call.1} parent=0 // pred_fallthru
    _
  // Predicated region
  $region6: #{_rate_embedding_call.1} parent=0 // pred_check
    _
  $region7: #{_rate_embedding_call.1} parent=0 // pred_check_branch
    %16 = sbr.rel (0) target = $region9
  $region8: #{_rate_embedding_call.1} parent=0 // pred_region
    _
  $region9: #{_rate_embedding_call.1} parent=0 // pred_fallthru
    _
  // Predicated region
  $region10: #{_rate_embedding_call.1} parent=0 // pred_check
    _
  $region11: #{_rate_embedding_call.1} parent=0 // pred_check_branch
    %18 = sbr.rel (0) target = $region13
  $region12: #{_rate_embedding_call.1} parent=0 // pred_region
    _
  $region13: #{_rate_embedding_call.1} parent=0 // pred_fallthru
    _
  // Predicated region
  $region14: #{_rate_embedding_call.1} parent=0 // pred_check
    _
  $region15: #{_rate_embedding_call.1} parent=0 // pred_check_branch
    %20 = sbr.rel (0) target = $region17
  $region16: #{_rate_embedding_call.1} parent=0 // pred_region
    _
  $region17: #{_rate_embedding_call.1} parent=0 // pred_fallthru
    _
  // Predicated region
  $region18: #{_rate_embedding_call.1} parent=0 // pred_check
    _
  $region19: #{_rate_embedding_call.1} parent=0 // pred_check_branch
    %22 = sbr.rel (0) target = $region21
  $region20: #{_rate_embedding_call.1} parent=0 // pred_region
    _
  $region21: #{_rate_embedding_call.1} parent=0 // pred_fallthru
    _
  // Predicated region
  $region22: #{_rate_embedding_call.1} parent=0 // pred_check
    _
  $region23: #{_rate_embedding_call.1} parent=0 // pred_check_branch
    %24 = sbr.rel (0) target = $region25
  $region24: #{_rate_embedding_call.1} parent=0 // pred_region
    _
  $region25: #{_rate_embedding_call.1} parent=0 // pred_fallthru
    _
  // Predicated region
  $region26: #{_rate_embedding_call.1} parent=0 // pred_check
    _
  $region27: #{_rate_embedding_call.1} parent=0 // pred_check_branch
    %26 = sbr.rel (0) target = $region29
  $region28: #{_rate_embedding_call.1} parent=0 // pred_region
    _
  $region29: #{_rate_embedding_call.1} parent=0 // pred_fallthru
    _
  %v28 = vld [vmem:[%s0] sm:$0xf]
  %v29 = vld [vmem:[%s1] sm:$0xf]
  %v30 = vld [vmem:[%s1 + $0x4] sm:$0xf]
  %v31 = vld [vmem:[%s1 + $0x8] sm:$0xf]
  %v32 = vld [vmem:[%s1 + $0xc] sm:$0xf]
  %v33 = vld [vmem:[%s2] sm:$0x1]
  %v35 = vlaneseq
  %v36 = vshrl.u32 %v35, 7
  %v37 = vsub.s32 0, %v36
  %v38 = vrot.slane %v33, %v37
  %v44 = vunpack.c.l.b16 %v29
  %v45 = vunpack.c.l.b16 %v30
  %v46 = vunpack.c.l.b16 %v31
  %v47 = vunpack.c.l.b16 %v32
  %v48 = vpack.c.b16 %v45, %v44
  %v49 = vpack.c.b16 %v47, %v46
  %vm52 = vcmask 261120
  %v54 = vsel %vm52, %v28, 0
  %56 = vmatprep.subr.bf16.mxu0 0
  %57 = vmatpush1.bf16.msra.mxu0 %v48
  %58 = vmatprep.subr.bf16.mxu0 0
  %59 = vmatpush1.bf16.msra.mxu0 %v49
  %60 = vmatprep.subr.bf16.mxu0 0
  %61 = vmatpush1.bf16.msra.mxu0 0
  %62 = vmatprep.subr.bf16.mxu0 0
  %63 = vmatpush1.bf16.msra.mxu0 0
  %64 = vmatprep.subr.bf16.mxu0 0
  %65 = vmatpush1.bf16.msra.mxu0 0
  %66 = vmatprep.subr.bf16.mxu0 0
  %67 = vmatpush1.bf16.msra.mxu0 0
  %68 = vmatprep.subr.bf16.mxu0 0
  %69 = vmatpush1.bf16.msra.mxu0 0
  %70 = vmatprep.subr.bf16.mxu0 0
  %71 = vmatpush1.bf16.msra.mxu0 0
  %72 = vmatprep.subr.bf16.mxu0 0
  %73 = vmatpush1.bf16.msra.mxu0 0
  %74 = vmatprep.subr.bf16.mxu0 0
  %75 = vmatpush1.bf16.msra.mxu0 0
  %76 = vmatprep.subr.bf16.mxu0 0
  %77 = vmatpush1.bf16.msra.mxu0 0
  %78 = vmatprep.subr.bf16.mxu0 0
  %79 = vmatpush1.bf16.msra.mxu0 0
  %80 = vmatprep.subr.bf16.mxu0 0
  %81 = vmatpush1.bf16.msra.mxu0 0
  %82 = vmatprep.subr.bf16.mxu0 0
  %83 = vmatpush1.bf16.msra.mxu0 0
  %84 = vmatprep.subr.bf16.mxu0 0
  %85 = vmatpush1.bf16.msra.mxu0 0
  %86 = vmatprep.subr.bf16.mxu0 0
  %87 = vmatpush1.bf16.msra.mxu0 0
  %88 = vmatprep.mubr.bf16.mxu0 0
  %89 = vmatmul.mubr.bf16.gmra.mrb[0].mxu0 %v54
  %v90 = vpop.f32.mrb[0].mxu0
  %v91 = vadd.f32 %v38, %v90
  %v92 = vpop.f32.mrb[0].mxu0
  %v93 = vpop.f32.mrb[0].mxu0
  %v94 = vpop.f32.mrb[0].mxu0
  %95 = vdwg.mxu0
  %v96 = vunpack.c.l.bf16 %v28
  %v97 = vadd.f32 %v91, %v96
  %v98 = vsel %vm52, %v97, 0.0
  %99 = vadd.xlane.f32.xlu0 %v98
  %v100 = vpop.xlane.xlu0 %99
  %v101 = vmul.f32 %v100, 0.03125
  %v102 = vmul.f32 %v97, %v97
  %v103 = vsel %vm52, %v102, 0.0
  %104 = vadd.xlane.f32.xlu0 %v103
  %v105 = vpop.xlane.xlu0 %104
  %v106 = vmul.f32 %v105, 0.03125
  %v107 = vmul.f32 %v101, %v101
  %v108 = vsub.f32 %v106, %v107
  %v109 = vld [vmem:[%s3] sm:$0x1]
  %v110 = vadd.f32 %v108, 1e-05
  %v111 = vrsqrt.pop %v110
  %v113 = vlaneseq
  %v114 = vshrl.u32 %v113, 7
  %v115 = vsub.s32 0, %v114
  %v116 = vrot.slane %v109, %v115
  %v118 = vmul.f32 %v116, %v111
  %v119 = vld [vmem:[%s4] sm:$0x1]
  %v120 = vmul.f32 %v101, %v118
  %v122 = vlaneseq
  %v123 = vshrl.u32 %v122, 7
  %v124 = vsub.s32 0, %v123
  %v125 = vrot.slane %v119, %v124
  %v127 = vsub.f32 %v125, %v120
  %v128 = vmul.f32 %v97, %v118
  %v129 = vadd.f32 %v128, %v127
  %v130 = vmax.f32 %v129, 0.0
  %v131 = vld [vmem:[%s5] sm:$0x1]
  %v133 = vlaneseq
  %v134 = vshrl.u32 %v133, 7
  %v135 = vsub.s32 0, %v134
  %v136 = vrot.slane %v131, %v135
  %v138 = vmul.f32 %v130, %v136
  %v139 = vsel %vm52, %v138, 0.0
  %140 = vadd.xlane.f32.xlu0 %v139
  %v141 = vpop.xlane.xlu0 %140
  %s142 = sld [smem:[#allocation2]]
  %v143 = vstv %s142
  %v144 = vadd.f32 %v141, %v143
  %v145 = vxor.u32 %v144, 2147483648
  %v146 = vmul.f32 %v145, 1.442695
  %v147 = vpow.pop %v146
  %v148 = vadd.f32 %v147, 1.0
  %v149 = vrcp.pop %v148
  %v150 = vmul.f32 1.0, %v149
  %vm151 = vcmask 7168
  %152 = vst.msk [vmem:[%s7] sm:$0xff] %vm151, %v150
  // Predicated region
  $region30: #{_rate_embedding_call.1} parent=0 // pred_check
    _
  $region31: #{_rate_embedding_call.1} parent=0 // pred_check_branch
    %154 = sbr.rel (0) target = $region33
  $region32: #{_rate_embedding_call.1} parent=0 // pred_region
    _
  $region33: #{_rate_embedding_call.1} parent=0 // pred_fallthru
    _
  // Predicated region
  $region34: #{_rate_embedding_call.1} parent=0 // pred_check
    _
  $region35: #{_rate_embedding_call.1} parent=0 // pred_check_branch
    %156 = sbr.rel (0) target = $region37
  $region36: #{_rate_embedding_call.1} parent=0 // pred_region
    _
  $region37: #{_rate_embedding_call.1} parent=0 // pred_fallthru
    _

// kernel: _rate_embedding_call.1
$region0: #{_rate_embedding_call.1}
  #allocation0 [shape = 'u32[]', space=smem, size = 0x4, offset = 0x4, fixed_abs, tag = 'smem constant byte address 0x4 - core index']
  #allocation1 [shape = 'u32[144,128]{1,0:T(1,128)}', space=vmem, size = 0x12000, scoped, tag = 'internal scratch']
  #allocation2 [shape = 'f32[1]{0:T(128)S(6)}', space=smem, size = 0x200, scoped, tag = 'scoped memory for _rate_embedding_call.1']
  %s0 = inlined_call_operand.vmem [shape: bf16[8,32], index: 0, kind: input, shape index: {}]
  %s1 = inlined_call_operand.vmem [shape: bf16[32,32], index: 1, kind: input, shape index: {}]
  %s2 = inlined_call_operand.vmem [shape: f32[1,32], index: 2, kind: input, shape index: {}]
  %s3 = inlined_call_operand.vmem [shape: f32[1,32], index: 3, kind: input, shape index: {}]
  %s4 = inlined_call_operand.vmem [shape: f32[1,32], index: 4, kind: input, shape index: {}]
  %s5 = inlined_call_operand.vmem [shape: f32[1,32], index: 5, kind: input, shape index: {}]
  %s6 = inlined_call_operand.<no memory space> [shape: f32[1], index: 6, kind: input, shape index: {}]
  %s7 = inlined_call_operand.vmem [shape: f32[8,1], index: 7, kind: output, shape index: {}]
  %s8 = sld [smem:[#allocation0]]
  $region38: #{_rate_embedding_call.1} parent=0
    _
  %s10 = ssub.s32 1, %s8
  %s11 = scalar_select 0, %s10, %s8
  %12 = sst [smem:[#allocation2]] %s6
  // Predicated region
  $region2: #{_rate_embedding_call.1} parent=0 // pred_check
    _
  $region3: #{_rate_embedding_call.1} parent=0 // pred_check_branch
    %14 = sbr.rel (0) target = $region5
  $region4: #{_rate_embedding_call.1} parent=0 // pred_region
    _
  $region5: #{_rate_embedding_call.1} parent=0 // pred_fallthru
    _
  // Predicated region
  $region6: #{_rate_embedding_call.1} parent=0 // pred_check
    _
  $region7: #{_rate_embedding_call.1} parent=0 // pred_check_branch
    %16 = sbr.rel (0) target = $region9
  $region8: #{_rate_embedding_call.1} parent=0 // pred_region
    _
  $region9: #{_rate_embedding_call.1} parent=0 // pred_fallthru
    _
  // Predicated region
  $region10: #{_rate_embedding_call.1} parent=0 // pred_check
    _
  $region11: #{_rate_embedding_call.1} parent=0 // pred_check_branch
    %18 = sbr.rel (0) target = $region13
  $region12: #{_rate_embedding_call.1} parent=0 // pred_region
    _
  $region13: #{_rate_embedding_call.1} parent=0 // pred_fallthru
    _
  // Predicated region
  $region14: #{_rate_embedding_call.1} parent=0 // pred_check
    _
  $region15: #{_rate_embedding_call.1} parent=0 // pred_check_branch
    %20 = sbr.rel (0) target = $region17
  $region16: #{_rate_embedding_call.1} parent=0 // pred_region
    _
  $region17: #{_rate_embedding_call.1} parent=0 // pred_fallthru
    _
  // Predicated region
  $region18: #{_rate_embedding_call.1} parent=0 // pred_check
    _
  $region19: #{_rate_embedding_call.1} parent=0 // pred_check_branch
    %22 = sbr.rel (0) target = $region21
  $region20: #{_rate_embedding_call.1} parent=0 // pred_region
    _
  $region21: #{_rate_embedding_call.1} parent=0 // pred_fallthru
    _
  // Predicated region
  $region22: #{_rate_embedding_call.1} parent=0 // pred_check
    _
  $region23: #{_rate_embedding_call.1} parent=0 // pred_check_branch
    %24 = sbr.rel (0) target = $region25
  $region24: #{_rate_embedding_call.1} parent=0 // pred_region
    _
  $region25: #{_rate_embedding_call.1} parent=0 // pred_fallthru
    _
  // Predicated region
  $region26: #{_rate_embedding_call.1} parent=0 // pred_check
    _
  $region27: #{_rate_embedding_call.1} parent=0 // pred_check_branch
    %26 = sbr.rel (0) target = $region29
  $region28: #{_rate_embedding_call.1} parent=0 // pred_region
    _
  $region29: #{_rate_embedding_call.1} parent=0 // pred_fallthru
    _
  %v28 = vld [vmem:[%s0] sm:$0xf]
  %v29 = vld [vmem:[%s1] sm:$0xf]
  %v30 = vld [vmem:[%s1 + $0x4] sm:$0xf]
  %v31 = vld [vmem:[%s1 + $0x8] sm:$0xf]
  %v32 = vld [vmem:[%s1 + $0xc] sm:$0xf]
  %v33 = vld [vmem:[%s2] sm:$0x1]
  %v35 = vlaneseq
  %v36 = vshrl.u32 %v35, 7
  %v37 = vsub.s32 0, %v36
  %v38 = vrot.slane %v33, %v37
  %v44 = vunpack.c.l.b16 %v29
  %v45 = vunpack.c.l.b16 %v30
  %v46 = vunpack.c.l.b16 %v31
  %v47 = vunpack.c.l.b16 %v32
  %v48 = vpack.c.b16 %v45, %v44
  %v49 = vpack.c.b16 %v47, %v46
  %vm52 = vcmask 261120
  %v54 = vsel %vm52, %v28, 0
  %56 = vmatprep.subr.bf16.mxu0 0
  %57 = vmatpush1.bf16.msra.mxu0 %v48
  %58 = vmatprep.subr.bf16.mxu0 0
  %59 = vmatpush1.bf16.msra.mxu0 %v49
  %60 = vmatprep.subr.bf16.mxu0 0
  %61 = vmatpush1.bf16.msra.mxu0 0
  %62 = vmatprep.subr.bf16.mxu0 0
  %63 = vmatpush1.bf16.msra.mxu0 0
  %64 = vmatprep.subr.bf16.mxu0 0
  %65 = vmatpush1.bf16.msra.mxu0 0
  %66 = vmatprep.subr.bf16.mxu0 0
  %67 = vmatpush1.bf16.msra.mxu0 0
  %68 = vmatprep.subr.bf16.mxu0 0
  %69 = vmatpush1.bf16.msra.mxu0 0
  %70 = vmatprep.subr.bf16.mxu0 0
  %71 = vmatpush1.bf16.msra.mxu0 0
  %72 = vmatprep.subr.bf16.mxu0 0
  %73 = vmatpush1.bf16.msra.mxu0 0
  %74 = vmatprep.subr.bf16.mxu0 0
  %75 = vmatpush1.bf16.msra.mxu0 0
  %76 = vmatprep.subr.bf16.mxu0 0
  %77 = vmatpush1.bf16.msra.mxu0 0
  %78 = vmatprep.subr.bf16.mxu0 0
  %79 = vmatpush1.bf16.msra.mxu0 0
  %80 = vmatprep.subr.bf16.mxu0 0
  %81 = vmatpush1.bf16.msra.mxu0 0
  %82 = vmatprep.subr.bf16.mxu0 0
  %83 = vmatpush1.bf16.msra.mxu0 0
  %84 = vmatprep.subr.bf16.mxu0 0
  %85 = vmatpush1.bf16.msra.mxu0 0
  %86 = vmatprep.subr.bf16.mxu0 0
  %87 = vmatpush1.bf16.msra.mxu0 0
  %88 = vmatprep.mubr.bf16.mxu0 0
  %89 = vmatmul.mubr.bf16.gmra.mrb[0].mxu0 %v54
  %v90 = vpop.f32.mrb[0].mxu0
  %v91 = vadd.f32 %v38, %v90
  %v92 = vpop.f32.mrb[0].mxu0
  %v93 = vpop.f32.mrb[0].mxu0
  %v94 = vpop.f32.mrb[0].mxu0
  %95 = vdwg.mxu0
  %v96 = vunpack.c.l.bf16 %v28
  %v97 = vadd.f32 %v91, %v96
  %v98 = vsel %vm52, %v97, 0.0
  %99 = vadd.xlane.f32.xlu0 %v98
  %v100 = vpop.xlane.xlu0 %99
  %v101 = vmul.f32 %v100, 0.03125
  %v102 = vmul.f32 %v97, %v97
  %v103 = vsel %vm52, %v102, 0.0
  %104 = vadd.xlane.f32.xlu0 %v103
  %v105 = vpop.xlane.xlu0 %104
  %v106 = vmul.f32 %v105, 0.03125
  %v107 = vmul.f32 %v101, %v101
  %v108 = vsub.f32 %v106, %v107
  %v109 = vld [vmem:[%s3] sm:$0x1]
  %v110 = vadd.f32 %v108, 1e-05
  %v111 = vrsqrt.pop %v110
  %v113 = vlaneseq
  %v114 = vshrl.u32 %v113, 7
  %v115 = vsub.s32 0, %v114
  %v116 = vrot.slane %v109, %v115
  %v118 = vmul.f32 %v116, %v111
  %v119 = vld [vmem:[%s4] sm:$0x1]
  %v120 = vmul.f32 %v101, %v118
  %v122 = vlaneseq
  %v123 = vshrl.u32 %v122, 7
  %v124 = vsub.s32 0, %v123
  %v125 = vrot.slane %v119, %v124
  %v127 = vsub.f32 %v125, %v120
  %v128 = vmul.f32 %v97, %v118
  %v129 = vadd.f32 %v128, %v127
  %v130 = vmax.f32 %v129, 0.0
  %v131 = vld [vmem:[%s5] sm:$0x1]
  %v133 = vlaneseq
  %v134 = vshrl.u32 %v133, 7
  %v135 = vsub.s32 0, %v134
  %v136 = vrot.slane %v131, %v135
  %v138 = vmul.f32 %v130, %v136
  %v139 = vsel %vm52, %v138, 0.0
  %140 = vadd.xlane.f32.xlu0 %v139
  %v141 = vpop.xlane.xlu0 %140
  %s142 = sld [smem:[#allocation2]]
  %v143 = vstv %s142
  %v144 = vadd.f32 %v141, %v143
  %v145 = vxor.u32 %v144, 2147483648
  %v146 = vmul.f32 %v145, 1.442695
  %v147 = vpow.pop %v146
  %v148 = vadd.f32 %v147, 1.0
  %v149 = vrcp.pop %v148
  %v150 = vmul.f32 1.0, %v149
  %vm151 = vcmask 7168
  %152 = vst.msk [vmem:[%s7] sm:$0xff] %vm151, %v150
  // Predicated region
  $region30: #{_rate_embedding_call.1} parent=0 // pred_check
    _
  $region31: #{_rate_embedding_call.1} parent=0 // pred_check_branch
    %154 = sbr.rel (0) target = $region33
  $region32: #{_rate_embedding_call.1} parent=0 // pred_region
    _
  $region33: #{_rate_embedding_call.1} parent=0 // pred_fallthru
    _
  // Predicated region
  $region34: #{_rate_embedding_call.1} parent=0 // pred_check
    _
  $region35: #{_rate_embedding_call.1} parent=0 // pred_check_branch
    %156 = sbr.rel (0) target = $region37
  $region36: #{_rate_embedding_call.1} parent=0 // pred_region
    _
  $region37: #{_rate_embedding_call.1} parent=0 // pred_fallthru
    _

</llo_original>
